<compile_context>
chip_gen: v7x
topology: tpu7x:2x2x1
jax: 0.10.0
libtpu: 0.0.40
codegen_flags: <defaults>
</compile_context>

<pallas_src>
import functools

import jax
import jax.numpy as jnp
from jax.experimental import pallas as pl
from jax.experimental.pallas import tpu as pltpu


def _policy_kernel(num_hidden, out_dim, compute_dtype, *refs):
    # refs layout:
    #   x_ref,
    #   (w_i, b_i) for each hidden layer          [num_hidden pairs]
    #   w_head [in, 2*out], b_head [1, 2*out]     (fused mean | log_std head)
    #   packed_out_ref [TILE_B, 2*out]            ( [mean | std] )
    x_ref = refs[0]
    idx = 1
    h = x_ref[...]  # f32 [TILE_B, in]
    for _ in range(num_hidden):
        w_ref, b_ref = refs[idx], refs[idx + 1]
        idx += 2
        # bf16 operands on the MXU, f32 accumulation; bias add / ReLU in f32 on the VPU.
        h = jnp.dot(h.astype(compute_dtype), w_ref[...],
                    preferred_element_type=jnp.float32) + b_ref[...]
        h = jnp.maximum(h, 0.0)

    w_head, b_head = refs[idx], refs[idx + 1]
    out_ref = refs[idx + 2]

    heads = jnp.dot(h.astype(compute_dtype), w_head[...],
                    preferred_element_type=jnp.float32) + b_head[...]

    # Lanes [0, out_dim) hold mean, lanes [out_dim, 2*out_dim) hold log_std.
    # Select with a lane-index mask instead of slicing (no cross-lane data movement);
    # exp over the whole tile is free filler on the EUP slot.
    lane = jax.lax.broadcasted_iota(jnp.int32, heads.shape, dimension=1)
    is_std_lane = lane >= out_dim
    std = jnp.exp(jnp.clip(heads, -20.0, 2.0))
    out_ref[...] = jnp.where(is_std_lane, std, heads)


def policy_forward(state, params, *, tile_b=256, compute_dtype=jnp.bfloat16):
    """Run the Policy forward pass in a single batch-tiled Pallas kernel.

    state:  [B, input_size] float32
    params: dict with
      'hidden': list of (W [in, out], b [1, out]) tuples
      'mean':   (W, b)      (last_fc)
      'logstd': (W, b)      (log_std head)
    Returns (mean, std), each [B, output_size] float32.
    """
    hidden = params["hidden"]
    wm, bm = params["mean"]
    ws, bs = params["logstd"]

    B, in_dim = state.shape
    out_dim = wm.shape[1]

    # Fused head parameters: one [in, 2*out] matmul instead of two [in, out] matmuls.
    w_head = jnp.concatenate([wm, ws], axis=1).astype(compute_dtype)
    b_head = jnp.concatenate([bm, bs], axis=1).astype(jnp.float32)

    tile_b = int(min(tile_b, B))
    grid = (pl.cdiv(B, tile_b),)

    inputs = [state.astype(jnp.float32)]
    in_specs = [pl.BlockSpec((tile_b, in_dim), lambda i: (i, 0))]
    for w, b in hidden:
        w_c = w.astype(compute_dtype)       # halve weight DMA bytes
        b_c = b.astype(jnp.float32)
        inputs.extend([w_c, b_c])
        in_specs.append(pl.BlockSpec(w_c.shape, lambda i: (0, 0)))  # VMEM-resident
        in_specs.append(pl.BlockSpec(b_c.shape, lambda i: (0, 0)))
    inputs.extend([w_head, b_head])
    in_specs.append(pl.BlockSpec(w_head.shape, lambda i: (0, 0)))
    in_specs.append(pl.BlockSpec(b_head.shape, lambda i: (0, 0)))

    out_specs = pl.BlockSpec((tile_b, 2 * out_dim), lambda i: (i, 0))

    # Advisory cost estimate so XLA schedules around the custom call sensibly.
    flops = 0
    d = in_dim
    for w, _ in hidden:
        flops += 2 * B * d * w.shape[1]
        d = w.shape[1]
    flops += 2 * B * d * (2 * out_dim)
    bytes_accessed = sum(int(x.size) * x.dtype.itemsize for x in inputs)
    bytes_accessed += B * 2 * out_dim * 4
    cost = pl.CostEstimate(flops=flops,
                           transcendentals=B * 2 * out_dim,
                           bytes_accessed=bytes_accessed)

    kernel = functools.partial(_policy_kernel, len(hidden), out_dim, compute_dtype)

    packed = pl.pallas_call(
        kernel,
        out_shape=jax.ShapeDtypeStruct((B, 2 * out_dim), jnp.float32),
        grid=grid,
        in_specs=in_specs,
        out_specs=out_specs,
        compiler_params=pltpu.CompilerParams(
            dimension_semantics=("parallel",),     # shard batch axis across v7x's 2 TCs
            vmem_limit_bytes=32 * 1024 * 1024,      # explicit, safe on v5e/v6e/v7x
        ),
        cost_estimate=cost,
    )(*inputs)

    mean = packed[:, :out_dim]
    std = packed[:, out_dim:]
    return mean, std


def init_policy_params(key, input_size, output_size, layer_sizes, init_w=0.001):
    """Deterministic init matching PyTorch semantics:
       - hidden Linear layers: uniform(-1/sqrt(fan_in), 1/sqrt(fan_in))  (default nn.Linear init)
       - last_fc / log_std:    uniform(-init_w, init_w)
    Weights stored as [in, out] (transposed vs. PyTorch's [out, in])."""
    params = {"hidden": []}
    in_size = input_size
    for next_size in layer_sizes:
        key, kw, kb = jax.random.split(key, 3)
        bound = 1.0 / jnp.sqrt(jnp.float32(in_size))
        w = jax.random.uniform(kw, (in_size, next_size), jnp.float32, -bound, bound)
        b = jax.random.uniform(kb, (1, next_size), jnp.float32, -bound, bound)
        params["hidden"].append((w, b))
        in_size = next_size

    key, kw, kb = jax.random.split(key, 3)
    wm = jax.random.uniform(kw, (in_size, output_size), jnp.float32, -init_w, init_w)
    bm = jax.random.uniform(kb, (1, output_size), jnp.float32, -init_w, init_w)
    params["mean"] = (wm, bm)

    key, kw, kb = jax.random.split(key, 3)
    ws = jax.random.uniform(kw, (in_size, output_size), jnp.float32, -init_w, init_w)
    bs = jax.random.uniform(kb, (1, output_size), jnp.float32, -init_w, init_w)
    params["logstd"] = (ws, bs)
    return params


def policy_forward_ref(state, params, compute_dtype=jnp.float32):
    """Pure-JAX reference (same math, optional bf16 matmul operands) for correctness checks."""
    h = state
    for w, b in params["hidden"]:
        h = jnp.dot(h.astype(compute_dtype), w.astype(compute_dtype),
                    preferred_element_type=jnp.float32) + b
        h = jnp.maximum(h, 0.0)
    wm, bm = params["mean"]
    ws, bs = params["logstd"]
    mean = jnp.dot(h.astype(compute_dtype), wm.astype(compute_dtype),
                   preferred_element_type=jnp.float32) + bm
    log_std = jnp.dot(h.astype(compute_dtype), ws.astype(compute_dtype),
                      preferred_element_type=jnp.float32) + bs
    log_std = jnp.clip(log_std, -20.0, 2.0)
    return mean, jnp.exp(log_std)


if __name__ == "__main__":
    # Small shapes consistent with the module: batch=2, obs dim=16, hidden=[32, 32], action dim=8.
    B, INPUT_SIZE, OUTPUT_SIZE = 2, 16, 8
    LAYER_SIZES = [32, 32]

    key = jax.random.PRNGKey(0)
    key, pkey, skey = jax.random.split(key, 3)
    params = init_policy_params(pkey, INPUT_SIZE, OUTPUT_SIZE, LAYER_SIZES, init_w=0.001)
    state = jax.random.normal(skey, (B, INPUT_SIZE), jnp.float32)

    mean, std = policy_forward(state, params)
    jax.block_until_ready((mean, std))

    # Check against a reference using the same bf16 matmul operands (tight tolerance) ...
    mean_bf, std_bf = policy_forward_ref(state, params, compute_dtype=jnp.bfloat16)
    assert jnp.allclose(mean, mean_bf, atol=1e-3, rtol=1e-2), "mean mismatch (bf16 ref)"
    assert jnp.allclose(std, std_bf, atol=1e-3, rtol=1e-2), "std mismatch (bf16 ref)"

    # ... and against the pure-f32 reference (loose tolerance, bf16 operand rounding).
    mean_f32, std_f32 = policy_forward_ref(state, params, compute_dtype=jnp.float32)
    assert jnp.allclose(mean, mean_f32, atol=5e-2, rtol=5e-2), "mean mismatch (f32 ref)"
    assert jnp.allclose(std, std_f32, atol=5e-2, rtol=5e-2), "std mismatch (f32 ref)"

    # Exercise the batch-tiled grid path (multiple tiles + ragged last tile), still small.
    key, skey2 = jax.random.split(key)
    state_big = jax.random.normal(skey2, (20, INPUT_SIZE), jnp.float32)
    mean_b, std_b = policy_forward(state_big, params, tile_b=8)
    jax.block_until_ready((mean_b, std_b))
    mean_b_ref, std_b_ref = policy_forward_ref(state_big, params, compute_dtype=jnp.bfloat16)
    assert jnp.allclose(mean_b, mean_b_ref, atol=1e-3, rtol=1e-2), "mean mismatch (grid)"
    assert jnp.allclose(std_b, std_b_ref, atol=1e-3, rtol=1e-2), "std mismatch (grid)"

    # TODO(synk): TanhNormal is a distribution object (sampling / log_prob); the kernel
    # returns its parameters (mean, std), which fully determine the density.
    print("KERNEL_OK")
</pallas_src>

<mosaic_0001>
module attributes {stable_mosaic.version = 11 : i64} {
  func.func @_policy_kernel(%arg0: i32, %arg1: memref<2x16xf32, #tpu.memory_space<vmem>>, %arg2: memref<16x32xbf16, #tpu.memory_space<vmem>>, %arg3: memref<1x32xf32, #tpu.memory_space<vmem>>, %arg4: memref<32x32xbf16, #tpu.memory_space<vmem>>, %arg5: memref<1x32xf32, #tpu.memory_space<vmem>>, %arg6: memref<32x16xbf16, #tpu.memory_space<vmem>>, %arg7: memref<1x16xf32, #tpu.memory_space<vmem>>, %arg8: memref<2x16xf32, #tpu.memory_space<vmem>>) attributes {dimension_semantics = [#tpu.dimension_semantics<parallel>], iteration_bounds = array<i64: 1>, scalar_prefetch = 0 : i64, scratch_operands = 0 : i64, tpu.core_type = #tpu.core_type<tc>, window_params = [{transform_indices = @transform_0, window_bounds = array<i64: 2, 16>}, {pipeline_mode = #tpu.pipeline_mode<synchronous>, transform_indices = @transform_1, window_bounds = array<i64: 16, 32>}, {pipeline_mode = #tpu.pipeline_mode<synchronous>, transform_indices = @transform_2, window_bounds = array<i64: 1, 32>}, {pipeline_mode = #tpu.pipeline_mode<synchronous>, transform_indices = @transform_3, window_bounds = array<i64: 32, 32>}, {pipeline_mode = #tpu.pipeline_mode<synchronous>, transform_indices = @transform_4, window_bounds = array<i64: 1, 32>}, {pipeline_mode = #tpu.pipeline_mode<synchronous>, transform_indices = @transform_5, window_bounds = array<i64: 32, 16>}, {pipeline_mode = #tpu.pipeline_mode<synchronous>, transform_indices = @transform_6, window_bounds = array<i64: 1, 16>}, {transform_indices = @transform_7, window_bounds = array<i64: 2, 16>}]} {
    %c0 = arith.constant 0 : index
    %c0_0 = arith.constant 0 : index
    %0 = vector.load %arg1[%c0, %c0_0] : memref<2x16xf32, #tpu.memory_space<vmem>>, vector<2x16xf32>
    %1 = arith.truncf %0 : vector<2x16xf32> to vector<2x16xbf16>
    %c0_1 = arith.constant 0 : index
    %c0_2 = arith.constant 0 : index
    %2 = vector.load %arg2[%c0_1, %c0_2] : memref<16x32xbf16, #tpu.memory_space<vmem>>, vector<16x32xbf16>
    %cst = arith.constant dense<0.000000e+00> : vector<2x32xf32>
    %3 = tpu.matmul %1, %2, %cst {dimension_numbers = #tpu.dot_dimension_numbers<[1], [0], [0], [1], [0, 0, 1, 1], [], []>} : vector<2x16xbf16>, vector<16x32xbf16>, vector<2x32xf32> -> vector<2x32xf32>
    %c0_3 = arith.constant 0 : index
    %c0_4 = arith.constant 0 : index
    %4 = vector.load %arg3[%c0_3, %c0_4] : memref<1x32xf32, #tpu.memory_space<vmem>>, vector<1x32xf32>
    %5 = vector.broadcast %4 : vector<1x32xf32> to vector<2x32xf32>
    %6 = arith.addf %3, %5 : vector<2x32xf32>
    %cst_5 = arith.constant 0.000000e+00 : f32
    %7 = vector.broadcast %cst_5 : f32 to vector<2x32xf32>
    %8 = arith.maximumf %6, %7 : vector<2x32xf32>
    %9 = arith.truncf %8 : vector<2x32xf32> to vector<2x32xbf16>
    %c0_6 = arith.constant 0 : index
    %c0_7 = arith.constant 0 : index
    %10 = vector.load %arg4[%c0_6, %c0_7] : memref<32x32xbf16, #tpu.memory_space<vmem>>, vector<32x32xbf16>
    %cst_8 = arith.constant dense<0.000000e+00> : vector<2x32xf32>
    %11 = tpu.matmul %9, %10, %cst_8 {dimension_numbers = #tpu.dot_dimension_numbers<[1], [0], [0], [1], [0, 0, 1, 1], [], []>} : vector<2x32xbf16>, vector<32x32xbf16>, vector<2x32xf32> -> vector<2x32xf32>
    %c0_9 = arith.constant 0 : index
    %c0_10 = arith.constant 0 : index
    %12 = vector.load %arg5[%c0_9, %c0_10] : memref<1x32xf32, #tpu.memory_space<vmem>>, vector<1x32xf32>
    %13 = vector.broadcast %12 : vector<1x32xf32> to vector<2x32xf32>
    %14 = arith.addf %11, %13 : vector<2x32xf32>
    %cst_11 = arith.constant 0.000000e+00 : f32
    %15 = vector.broadcast %cst_11 : f32 to vector<2x32xf32>
    %16 = arith.maximumf %14, %15 : vector<2x32xf32>
    %17 = arith.truncf %16 : vector<2x32xf32> to vector<2x32xbf16>
    %c0_12 = arith.constant 0 : index
    %c0_13 = arith.constant 0 : index
    %18 = vector.load %arg6[%c0_12, %c0_13] : memref<32x16xbf16, #tpu.memory_space<vmem>>, vector<32x16xbf16>
    %cst_14 = arith.constant dense<0.000000e+00> : vector<2x16xf32>
    %19 = tpu.matmul %17, %18, %cst_14 {dimension_numbers = #tpu.dot_dimension_numbers<[1], [0], [0], [1], [0, 0, 1, 1], [], []>} : vector<2x32xbf16>, vector<32x16xbf16>, vector<2x16xf32> -> vector<2x16xf32>
    %c0_15 = arith.constant 0 : index
    %c0_16 = arith.constant 0 : index
    %20 = vector.load %arg7[%c0_15, %c0_16] : memref<1x16xf32, #tpu.memory_space<vmem>>, vector<1x16xf32>
    %21 = vector.broadcast %20 : vector<1x16xf32> to vector<2x16xf32>
    %22 = arith.addf %19, %21 : vector<2x16xf32>
    %23 = tpu.iota {dimensions = array<i32: 1>} : vector<2x16xi32>
    %c8_i32 = arith.constant 8 : i32
    %24 = vector.broadcast %c8_i32 : i32 to vector<2x16xi32>
    %25 = arith.cmpi sge, %23, %24 : vector<2x16xi32>
    %cst_17 = arith.constant -2.000000e+01 : f32
    %cst_18 = arith.constant 2.000000e+00 : f32
    %26 = vector.broadcast %cst_17 : f32 to vector<2x16xf32>
    %27 = arith.maximumf %26, %22 : vector<2x16xf32>
    %28 = vector.broadcast %cst_18 : f32 to vector<2x16xf32>
    %29 = arith.minimumf %28, %27 : vector<2x16xf32>
    %30 = math.exp %29 : vector<2x16xf32>
    %31 = arith.select %25, %30, %22 : vector<2x16xi1>, vector<2x16xf32>
    %c0_19 = arith.constant 0 : index
    %c0_20 = arith.constant 0 : index
    %32 = vector.load %arg8[%c0_19, %c0_20] : memref<2x16xf32, #tpu.memory_space<vmem>>, vector<2x16xf32>
    tpu.vector_store %arg8[%c0_19, %c0_20], %31 {strides = array<i32>} : memref<2x16xf32, #tpu.memory_space<vmem>>, vector<2x16xf32>,
    return
  }
  func.func @transform_0(%arg0: i32) -> (i32, i32) {
    %c0_i32 = arith.constant 0 : i32
    %c0_i32_0 = arith.constant 0 : i32
    return %arg0, %c0_i32 : i32, i32
  }
  func.func @transform_1(%arg0: i32) -> (i32, i32) {
    %c0_i32 = arith.constant 0 : i32
    %c0_i32_0 = arith.constant 0 : i32
    %c0_i32_1 = arith.constant 0 : i32
    return %c0_i32, %c0_i32_0 : i32, i32
  }
  func.func @transform_2(%arg0: i32) -> (i32, i32) {
    %c0_i32 = arith.constant 0 : i32
    %c0_i32_0 = arith.constant 0 : i32
    %c0_i32_1 = arith.constant 0 : i32
    return %c0_i32, %c0_i32_0 : i32, i32
  }
  func.func @transform_3(%arg0: i32) -> (i32, i32) {
    %c0_i32 = arith.constant 0 : i32
    %c0_i32_0 = arith.constant 0 : i32
    %c0_i32_1 = arith.constant 0 : i32
    return %c0_i32, %c0_i32_0 : i32, i32
  }
  func.func @transform_4(%arg0: i32) -> (i32, i32) {
    %c0_i32 = arith.constant 0 : i32
    %c0_i32_0 = arith.constant 0 : i32
    %c0_i32_1 = arith.constant 0 : i32
    return %c0_i32, %c0_i32_0 : i32, i32
  }
  func.func @transform_5(%arg0: i32) -> (i32, i32) {
    %c0_i32 = arith.constant 0 : i32
    %c0_i32_0 = arith.constant 0 : i32
    %c0_i32_1 = arith.constant 0 : i32
    return %c0_i32, %c0_i32_0 : i32, i32
  }
  func.func @transform_6(%arg0: i32) -> (i32, i32) {
    %c0_i32 = arith.constant 0 : i32
    %c0_i32_0 = arith.constant 0 : i32
    %c0_i32_1 = arith.constant 0 : i32
    return %c0_i32, %c0_i32_0 : i32, i32
  }
  func.func @transform_7(%arg0: i32) -> (i32, i32) {
    %c0_i32 = arith.constant 0 : i32
    %c0_i32_0 = arith.constant 0 : i32
    return %arg0, %c0_i32 : i32, i32
  }
}

</mosaic_0001>

<llo_original>
// kernel: tpu_custom_call.1
$region0: #{tpu_custom_call.1}
  #allocation0 [shape = 'u32[]', space=smem, size = 0x4, offset = 0x4, fixed_abs, tag = 'smem constant byte address 0x4 - core index']
  #allocation1 [shape = 'u32[144,128]{1,0:T(1,128)}', space=vmem, size = 0x12000, scoped, tag = 'internal scratch']
  %s0 = inlined_call_operand.vmem [shape: f32[2,16], index: 0, kind: input, shape index: {}]
  %s1 = inlined_call_operand.vmem [shape: bf16[16,32], index: 1, kind: input, shape index: {}]
  %s2 = inlined_call_operand.vmem [shape: f32[1,32], index: 2, kind: input, shape index: {}]
  %s3 = inlined_call_operand.vmem [shape: bf16[32,32], index: 3, kind: input, shape index: {}]
  %s4 = inlined_call_operand.vmem [shape: f32[1,32], index: 4, kind: input, shape index: {}]
  %s5 = inlined_call_operand.vmem [shape: bf16[32,16], index: 5, kind: input, shape index: {}]
  %s6 = inlined_call_operand.vmem [shape: f32[1,16], index: 6, kind: input, shape index: {}]
  %s7 = inlined_call_operand.hbm [shape: f32[2,16], index: 7, kind: output, shape index: {}]
  %s8 = sld [smem:[#allocation0]]
  $region38: #{tpu_custom_call.1} parent=0
    _
  %s10 = ssub.s32 1, %s8
  %s11 = scalar_select 0, %s10, %s8
  $region1: #{tpu_custom_call.1} parent=0
    #allocation2 [shape = 'u8[1024]{0}', space=vmem, size = 0x400, scoped, tag = 'output window, operand 0, single buffered']
    #allocation3 [shape = 's32[1]{0}', space=sflag, size = 0x4, scoped, tag = 'scoped memory for tpu_custom_call.1']
    %12 = vsyncpa [#allocation3], 0
    // Predicated region
    $region2: #{tpu_custom_call.1} parent=1 // pred_check
      _
    $region3: #{tpu_custom_call.1} parent=1 // pred_check_branch
      %14 = sbr.rel (0) target = $region5
    $region4: #{tpu_custom_call.1} parent=1 // pred_region
      _
    $region5: #{tpu_custom_call.1} parent=1 // pred_fallthru
      _
    // Predicated region
    $region6: #{tpu_custom_call.1} parent=1 // pred_check
      _
    $region7: #{tpu_custom_call.1} parent=1 // pred_check_branch
      %16 = sbr.rel (0) target = $region9
    $region8: #{tpu_custom_call.1} parent=1 // pred_region
      _
    $region9: #{tpu_custom_call.1} parent=1 // pred_fallthru
      _
    // Predicated region
    $region10: #{tpu_custom_call.1} parent=1 // pred_check
      _
    $region11: #{tpu_custom_call.1} parent=1 // pred_check_branch
      %18 = sbr.rel (0) target = $region13
    $region12: #{tpu_custom_call.1} parent=1 // pred_region
      _
    $region13: #{tpu_custom_call.1} parent=1 // pred_fallthru
      _
    // Predicated region
    $region14: #{tpu_custom_call.1} parent=1 // pred_check
      _
    $region15: #{tpu_custom_call.1} parent=1 // pred_check_branch
      %20 = sbr.rel (0) target = $region17
    $region16: #{tpu_custom_call.1} parent=1 // pred_region
      _
    $region17: #{tpu_custom_call.1} parent=1 // pred_fallthru
      _
    // Predicated region
    $region18: #{tpu_custom_call.1} parent=1 // pred_check
      _
    $region19: #{tpu_custom_call.1} parent=1 // pred_check_branch
      %22 = sbr.rel (0) target = $region21
    $region20: #{tpu_custom_call.1} parent=1 // pred_region
      _
    $region21: #{tpu_custom_call.1} parent=1 // pred_fallthru
      _
    // Predicated region
    $region22: #{tpu_custom_call.1} parent=1 // pred_check
      _
    $region23: #{tpu_custom_call.1} parent=1 // pred_check_branch
      %24 = sbr.rel (0) target = $region25
    $region24: #{tpu_custom_call.1} parent=1 // pred_region
      _
    $region25: #{tpu_custom_call.1} parent=1 // pred_fallthru
      _
    // Predicated region
    $region26: #{tpu_custom_call.1} parent=1 // pred_check
      _
    $region27: #{tpu_custom_call.1} parent=1 // pred_check_branch
      %26 = sbr.rel (0) target = $region29
    $region28: #{tpu_custom_call.1} parent=1 // pred_region
      _
    $region29: #{tpu_custom_call.1} parent=1 // pred_fallthru
      _
    %v28 = vld [vmem:[%s0] sm:$0x3]
    %v29 = vpack.c.bf16 %v28, %v28
    %v30 = vld [vmem:[%s1] sm:$0xf]
    %v31 = vld [vmem:[%s1 + $0x4] sm:$0xf]
    %v32 = vld [vmem:[%s2] sm:$0x1]
    %v34 = vlaneseq
    %v35 = vshrl.u32 %v34, 7
    %v36 = vsub.s32 0, %v35
    %v37 = vrot.slane %v32, %v36
    %v41 = vunpack.c.l.b16 %v30
    %v42 = vunpack.c.l.b16 %v31
    %v43 = vpack.c.b16 %v42, %v41
    %vm45 = vcmask 130048
    %v47 = vsel %vm45, %v29, 0
    %49 = vmatprep.subr.bf16.mxu0 0
    %50 = vmatpush1.bf16.msra.mxu0 %v43
    %51 = vmatprep.subr.bf16.mxu0 0
    %52 = vmatpush1.bf16.msra.mxu0 0
    %53 = vmatprep.subr.bf16.mxu0 0
    %54 = vmatpush1.bf16.msra.mxu0 0
    %55 = vmatprep.subr.bf16.mxu0 0
    %56 = vmatpush1.bf16.msra.mxu0 0
    %57 = vmatprep.subr.bf16.mxu0 0
    %58 = vmatpush1.bf16.msra.mxu0 0
    %59 = vmatprep.subr.bf16.mxu0 0
    %60 = vmatpush1.bf16.msra.mxu0 0
    %61 = vmatprep.subr.bf16.mxu0 0
    %62 = vmatpush1.bf16.msra.mxu0 0
    %63 = vmatprep.subr.bf16.mxu0 0
    %64 = vmatpush1.bf16.msra.mxu0 0
    %65 = vmatprep.subr.bf16.mxu0 0
    %66 = vmatpush1.bf16.msra.mxu0 0
    %67 = vmatprep.subr.bf16.mxu0 0
    %68 = vmatpush1.bf16.msra.mxu0 0
    %69 = vmatprep.subr.bf16.mxu0 0
    %70 = vmatpush1.bf16.msra.mxu0 0
    %71 = vmatprep.subr.bf16.mxu0 0
    %72 = vmatpush1.bf16.msra.mxu0 0
    %73 = vmatprep.subr.bf16.mxu0 0
    %74 = vmatpush1.bf16.msra.mxu0 0
    %75 = vmatprep.subr.bf16.mxu0 0
    %76 = vmatpush1.bf16.msra.mxu0 0
    %77 = vmatprep.subr.bf16.mxu0 0
    %78 = vmatpush1.bf16.msra.mxu0 0
    %79 = vmatprep.subr.bf16.mxu0 0
    %80 = vmatpush1.bf16.msra.mxu0 0
    %81 = vmatprep.mubr.bf16.mxu0 0
    %82 = vmatmul.mubr.bf16.gmra.mrb[0].mxu0 %v47
    %v83 = vpop.f32.mrb[0].mxu0
    %v84 = vadd.f32 %v37, %v83
    %v85 = vpop.f32.mrb[0].mxu0
    %v86 = vpop.f32.mrb[0].mxu0
    %v87 = vpop.f32.mrb[0].mxu0
    %88 = vdwg.mxu0
    %v89 = vmax.f32 %v84, 0.0
    %v90 = vpack.c.bf16 %v89, %v89
    %v91 = vld [vmem:[%s3] sm:$0xf]
    %v92 = vld [vmem:[%s3 + $0x4] sm:$0xf]
    %v93 = vld [vmem:[%s3 + $0x8] sm:$0xf]
    %v94 = vld [vmem:[%s3 + $0xc] sm:$0xf]
    %v95 = vld [vmem:[%s4] sm:$0x1]
    %v97 = vlaneseq
    %v98 = vshrl.u32 %v97, 7
    %v99 = vsub.s32 0, %v98
    %v100 = vrot.slane %v95, %v99
    %v106 = vunpack.c.l.b16 %v91
    %v107 = vunpack.c.l.b16 %v92
    %v108 = vunpack.c.l.b16 %v93
    %v109 = vunpack.c.l.b16 %v94
    %v110 = vpack.c.b16 %v107, %v106
    %v111 = vpack.c.b16 %v109, %v108
    %vm114 = vcmask 261120
    %v116 = vsel %vm114, %v90, 0
    %118 = vmatprep.subr.bf16.mxu0 0
    %119 = vmatpush1.bf16.msra.mxu0 %v110
    %120 = vmatprep.subr.bf16.mxu0 0
    %121 = vmatpush1.bf16.msra.mxu0 %v111
    %122 = vmatprep.subr.bf16.mxu0 0
    %123 = vmatpush1.bf16.msra.mxu0 0
    %124 = vmatprep.subr.bf16.mxu0 0
    %125 = vmatpush1.bf16.msra.mxu0 0
    %126 = vmatprep.subr.bf16.mxu0 0
    %127 = vmatpush1.bf16.msra.mxu0 0
    %128 = vmatprep.subr.bf16.mxu0 0
    %129 = vmatpush1.bf16.msra.mxu0 0
    %130 = vmatprep.subr.bf16.mxu0 0
    %131 = vmatpush1.bf16.msra.mxu0 0
    %132 = vmatprep.subr.bf16.mxu0 0
    %133 = vmatpush1.bf16.msra.mxu0 0
    %134 = vmatprep.subr.bf16.mxu0 0
    %135 = vmatpush1.bf16.msra.mxu0 0
    %136 = vmatprep.subr.bf16.mxu0 0
    %137 = vmatpush1.bf16.msra.mxu0 0
    %138 = vmatprep.subr.bf16.mxu0 0
    %139 = vmatpush1.bf16.msra.mxu0 0
    %140 = vmatprep.subr.bf16.mxu0 0
    %141 = vmatpush1.bf16.msra.mxu0 0
    %142 = vmatprep.subr.bf16.mxu0 0
    %143 = vmatpush1.bf16.msra.mxu0 0
    %144 = vmatprep.subr.bf16.mxu0 0
    %145 = vmatpush1.bf16.msra.mxu0 0
    %146 = vmatprep.subr.bf16.mxu0 0
    %147 = vmatpush1.bf16.msra.mxu0 0
    %148 = vmatprep.subr.bf16.mxu0 0
    %149 = vmatpush1.bf16.msra.mxu0 0
    %150 = vmatprep.mubr.bf16.mxu0 0
    %151 = vmatmul.mubr.bf16.gmra.mrb[0].mxu0 %v116
    %v152 = vpop.f32.mrb[0].mxu0
    %v153 = vadd.f32 %v100, %v152
    %v154 = vpop.f32.mrb[0].mxu0
    %v155 = vpop.f32.mrb[0].mxu0
    %v156 = vpop.f32.mrb[0].mxu0
    %157 = vdwg.mxu0
    %v158 = vmax.f32 %v153, 0.0
    %v159 = vpack.c.bf16 %v158, %v158
    %v160 = vld [vmem:[%s5] sm:$0xf]
    %v161 = vld [vmem:[%s5 + $0x4] sm:$0xf]
    %v162 = vld [vmem:[%s5 + $0x8] sm:$0xf]
    %v163 = vld [vmem:[%s5 + $0xc] sm:$0xf]
    %v164 = vld [vmem:[%s6] sm:$0x1]
    %v166 = vlaneseq
    %v167 = vshrl.u32 %v166, 7
    %v168 = vsub.s32 0, %v167
    %v169 = vrot.slane %v164, %v168
    %v175 = vunpack.c.l.b16 %v160
    %v176 = vunpack.c.l.b16 %v161
    %v177 = vunpack.c.l.b16 %v162
    %v178 = vunpack.c.l.b16 %v163
    %v179 = vpack.c.b16 %v176, %v175
    %v180 = vpack.c.b16 %v178, %v177
    %v184 = vsel %vm114, %v159, 0
    %186 = vmatprep.subr.bf16.mxu0 0
    %187 = vmatpush1.bf16.msra.mxu0 %v179
    %188 = vmatprep.subr.bf16.mxu0 0
    %189 = vmatpush1.bf16.msra.mxu0 %v180
    %190 = vmatprep.subr.bf16.mxu0 0
    %191 = vmatpush1.bf16.msra.mxu0 0
    %192 = vmatprep.subr.bf16.mxu0 0
    %193 = vmatpush1.bf16.msra.mxu0 0
    %194 = vmatprep.subr.bf16.mxu0 0
    %195 = vmatpush1.bf16.msra.mxu0 0
    %196 = vmatprep.subr.bf16.mxu0 0
    %197 = vmatpush1.bf16.msra.mxu0 0
    %198 = vmatprep.subr.bf16.mxu0 0
    %199 = vmatpush1.bf16.msra.mxu0 0
    %200 = vmatprep.subr.bf16.mxu0 0
    %201 = vmatpush1.bf16.msra.mxu0 0
    %202 = vmatprep.subr.bf16.mxu0 0
    %203 = vmatpush1.bf16.msra.mxu0 0
    %204 = vmatprep.subr.bf16.mxu0 0
    %205 = vmatpush1.bf16.msra.mxu0 0
    %206 = vmatprep.subr.bf16.mxu0 0
    %207 = vmatpush1.bf16.msra.mxu0 0
    %208 = vmatprep.subr.bf16.mxu0 0
    %209 = vmatpush1.bf16.msra.mxu0 0
    %210 = vmatprep.subr.bf16.mxu0 0
    %211 = vmatpush1.bf16.msra.mxu0 0
    %212 = vmatprep.subr.bf16.mxu0 0
    %213 = vmatpush1.bf16.msra.mxu0 0
    %214 = vmatprep.subr.bf16.mxu0 0
    %215 = vmatpush1.bf16.msra.mxu0 0
    %216 = vmatprep.subr.bf16.mxu0 0
    %217 = vmatpush1.bf16.msra.mxu0 0
    %218 = vmatprep.mubr.bf16.mxu0 0
    %219 = vmatmul.mubr.bf16.gmra.mrb[0].mxu0 %v184
    %v220 = vpop.f32.mrb[0].mxu0
    %v221 = vadd.f32 %v169, %v220
    %v222 = vpop.f32.mrb[0].mxu0
    %v223 = vpop.f32.mrb[0].mxu0
    %v224 = vpop.f32.mrb[0].mxu0
    %225 = vdwg.mxu0
    %v226 = vlaneseq
    %v227 = vand.u32 %v226, 127
    %vm228 = vcmp.ge.s32.totalorder %v227, 8
    %v229 = vmax.f32 %v221, -20.0
    %v230 = vmin.f32 %v229, 2.0
    %v231 = vmul.f32 %v230, 1.442695
    %v232 = vpow.pop %v231
    %v233 = vsel %vm228, %v232, %v221
    %vm234 = vcmask 123904
    %235 = vst.msk [vmem:[#allocation2] sm:$0x3] %vm234, %v233
    // Predicated region
    $region30: #{tpu_custom_call.1} parent=1 // pred_check
      _
    $region31: #{tpu_custom_call.1} parent=1 // pred_check_branch
      %237 = sbr.rel (0) target = $region33
    $region32: #{tpu_custom_call.1} parent=1 // pred_region
      %s239 = ssub.s32 32, 32
      %240 = vsyncadd [#allocation3], %s239
      %s242 = sshll.u32 [#allocation2], 4
      %s243 = int_to_ptr.vmem [resolvable:$true] %s242
      %245 = dma.vmem_to_hbm [thread:$0]  %s243, 32, %s7, [#allocation3]
    $region33: #{tpu_custom_call.1} parent=1 // pred_fallthru
      _
    // Predicated region
    $region34: #{tpu_custom_call.1} parent=1 // pred_check
      _
    $region35: #{tpu_custom_call.1} parent=1 // pred_check_branch
      %247 = sbr.rel (0) target = $region37
    $region36: #{tpu_custom_call.1} parent=1 // pred_region
      %248 = dma.done [#allocation3], 32
    $region37: #{tpu_custom_call.1} parent=1 // pred_fallthru
      _
    %249 = vsyncpa [#allocation3], 1

</llo_original>
